<compile_context>
chip_gen: v6e
topology: v6e:2x2x1
jax: 0.10.0
libtpu: 0.0.40
codegen_flags: <defaults>
</compile_context>

<pallas_src>
import functools

import jax
import jax.numpy as jnp
from jax.experimental import pallas as pl
from jax.experimental.pallas import tpu as pltpu


def _ce2d_kernel(x_ref, t_ref, out_ref, *, num_valid_rows):
    # x_ref  : (1, C, R_TILE, 128)  logits block
    # t_ref  : (1, 1, R_TILE, 128)  targets block (int8/int32; -1 marks lane pad)
    # out_ref: (1, 1, 8, 128)       f32 per-(batch, tile) partial-sum block
    j = pl.program_id(1)

    x = x_ref[0].astype(jnp.float32)        # (C, R, 128)
    t = t_ref[0, 0].astype(jnp.int32)       # (R, 128)
    c_dim, r_blk, l_dim = x.shape

    # Numerically-stable per-pixel logsumexp and target pick, reducing over the
    # leading (non-tiled) class axis -> pure VPU/EUP work, no XLU.
    m = jnp.max(x, axis=0)                              # (R, 128)
    s = x - m[None]                                     # (C, R, 128)
    sum_exp = jnp.sum(jnp.exp(s), axis=0)               # (R, 128)
    cls = jax.lax.broadcasted_iota(jnp.int32, (c_dim, r_blk, l_dim), 0)
    picked = jnp.sum(jnp.where(cls == t[None], s, jnp.float32(0.0)), axis=0)

    # Mask: (a) rows past the end of the array (ragged last tile, garbage data)
    #       (b) lane-padded pixels (target == -1).
    row_id = j * r_blk + jax.lax.broadcasted_iota(jnp.int32, (r_blk, l_dim), 0)
    valid = (t >= 0) & (row_id < num_valid_rows)

    # per-pixel NLL = logsumexp(x) - x[target]  (both terms share the shift m)
    loss = jnp.where(valid, jnp.log(sum_exp) - picked, jnp.float32(0.0))

    # Reduce (R, 128) -> (8, 128) partial sum for this (batch, tile) step.
    if r_blk % 8 == 0:
        part = jnp.sum(loss.reshape(r_blk // 8, 8, l_dim), axis=0)
    else:
        # Tiny / odd blocks: one small sublane reduce, park the result in row 0.
        colsum = jnp.sum(loss, axis=0, keepdims=True)            # (1, 128)
        sub = jax.lax.broadcasted_iota(jnp.int32, (8, l_dim), 0)
        part = jnp.where(sub == 0, colsum, jnp.float32(0.0))     # (8, 128)
    out_ref[0, 0] = part


def cross_entropy_loss_2d(logits_nchw, targets_nhw, *, vmem_budget_bytes=24 << 20):
    N, C, H, W = logits_nchw.shape
    HW = H * W
    total_pixels = N * H * W

    # Lane padding so the pixel axis can be viewed as (rows, 128).
    lane_pad = (-HW) % 128
    R = (HW + lane_pad) // 128

    x = logits_nchw.reshape(N, C, HW)             # native NCHW view, no transpose
    t_dtype = jnp.int8 if C <= 127 else jnp.int32
    t = targets_nhw.reshape(N, 1, HW).astype(t_dtype)
    if lane_pad:
        # TODO(synk): rare path (H*W % 128 != 0) costs one extra HBM copy.
        x = jnp.pad(x, ((0, 0), (0, 0), (0, lane_pad)))
        t = jnp.pad(t, ((0, 0), (0, 0), (0, lane_pad)), constant_values=-1)
    x = x.reshape(N, C, R, 128)
    t = t.reshape(N, 1, R, 128)

    # Row-tile sizing: double-buffered x & t blocks plus ~4 full-block f32
    # temporaries must fit the VMEM budget (headroom under the 32 MiB limit).
    x_row = C * 128 * jnp.dtype(logits_nchw.dtype).itemsize
    t_row = 128 * jnp.dtype(t_dtype).itemsize
    f32_row = C * 128 * 4
    per_row = 2 * x_row + 2 * t_row + 4 * f32_row
    r_tile = max(32, (vmem_budget_bytes // per_row) // 32 * 32)
    if r_tile >= R:
        r_tile = R                                # full extent: always legal
    num_tiles = pl.cdiv(R, r_tile)

    kernel = functools.partial(_ce2d_kernel, num_valid_rows=R)

    partials = pl.pallas_call(
        kernel,
        out_shape=jax.ShapeDtypeStruct((N, num_tiles, 8, 128), jnp.float32),
        grid_spec=pltpu.PrefetchScalarGridSpec(
            num_scalar_prefetch=0,
            grid=(N, num_tiles),
            in_specs=[
                pl.BlockSpec((1, C, r_tile, 128), lambda n, j: (n, 0, j, 0)),
                pl.BlockSpec((1, 1, r_tile, 128), lambda n, j: (n, 0, j, 0)),
            ],
            out_specs=pl.BlockSpec((1, 1, 8, 128), lambda n, j: (n, j, 0, 0)),
        ),
        compiler_params=pltpu.CompilerParams(
            dimension_semantics=("parallel", "parallel"),
            vmem_limit_bytes=32 * 1024 * 1024,
        ),
    )(x, t)

    # size_average=True -> mean over all N*H*W pixels (no class weights).
    return jnp.sum(partials) * jnp.float32(1.0 / total_pixels)


def _reference_loss(logits_nchw, targets_nhw):
    # Plain-JAX reference: mean over pixels of -log_softmax(logits, axis=1)[target]
    logp = jax.nn.log_softmax(logits_nchw.astype(jnp.float32), axis=1)  # (N,C,H,W)
    picked = jnp.take_along_axis(
        logp, targets_nhw[:, None, :, :].astype(jnp.int32), axis=1
    )[:, 0]
    return -jnp.mean(picked)


if __name__ == "__main__":
    key = jax.random.PRNGKey(0)
    k1, k2 = jax.random.split(key)

    N, C, H, W = 2, 4, 16, 16
    logits = jax.random.normal(k1, (N, C, H, W), dtype=jnp.float32)
    targets = jax.random.randint(k2, (N, H, W), 0, C, dtype=jnp.int32)

    loss = cross_entropy_loss_2d(logits, targets)
    loss = jax.block_until_ready(loss)

    ref = jax.block_until_ready(_reference_loss(logits, targets))
    assert jnp.allclose(loss, ref, atol=1e-5, rtol=1e-5), (loss, ref)

    print("KERNEL_OK")
</pallas_src>

<mosaic_0001>
module attributes {stable_mosaic.version = 11 : i64} {
  func.func @_ce2d_kernel(%arg0: i32, %arg1: i32, %arg2: memref<1x4x2x128xf32, #tpu.memory_space<vmem>>, %arg3: memref<1x1x2x128xi8, #tpu.memory_space<vmem>>, %arg4: memref<1x1x8x128xf32, #tpu.memory_space<vmem>>) attributes {dimension_semantics = [#tpu.dimension_semantics<parallel>, #tpu.dimension_semantics<parallel>], iteration_bounds = array<i64: 2, 1>, scalar_prefetch = 0 : i64, scratch_operands = 0 : i64, tpu.core_type = #tpu.core_type<tc>, window_params = [{transform_indices = @transform_0, window_bounds = array<i64: 1, 4, 2, 128>}, {transform_indices = @transform_1, window_bounds = array<i64: 1, 1, 2, 128>}, {transform_indices = @transform_2, window_bounds = array<i64: 1, 1, 8, 128>}]} {
    %c0 = arith.constant 0 : index
    %c0_0 = arith.constant 0 : index
    %c0_1 = arith.constant 0 : index
    %c0_2 = arith.constant 0 : index
    %0 = vector.load %arg2[%c0, %c0_0, %c0_1, %c0_2] : memref<1x4x2x128xf32, #tpu.memory_space<vmem>>, vector<1x4x2x128xf32>
    %1 = vector.shape_cast %0 : vector<1x4x2x128xf32> to vector<4x2x128xf32>
    %c0_3 = arith.constant 0 : index
    %c0_4 = arith.constant 0 : index
    %c0_5 = arith.constant 0 : index
    %c0_6 = arith.constant 0 : index
    %2 = vector.load %arg3[%c0_3, %c0_4, %c0_5, %c0_6] : memref<1x1x2x128xi8, #tpu.memory_space<vmem>>, vector<1x1x2x128xi8>
    %3 = vector.shape_cast %2 : vector<1x1x2x128xi8> to vector<2x128xi8>
    %4 = arith.extsi %3 : vector<2x128xi8> to vector<2x128xi32>
    %cst = arith.constant dense<0xFF800000> : vector<2x128xf32>
    %5 = vector.multi_reduction <maximumf>, %1, %cst [0] : vector<4x2x128xf32> to vector<2x128xf32>
    %6 = vector.shape_cast %5 : vector<2x128xf32> to vector<1x2x128xf32>
    %7 = vector.broadcast %6 : vector<1x2x128xf32> to vector<4x2x128xf32>
    %8 = arith.subf %1, %7 : vector<4x2x128xf32>
    %9 = math.exp %8 : vector<4x2x128xf32>
    %cst_7 = arith.constant dense<0.000000e+00> : vector<2x128xf32>
    %10 = vector.multi_reduction <add>, %9, %cst_7 [0] : vector<4x2x128xf32> to vector<2x128xf32>
    %11 = tpu.iota {dimensions = array<i32: 0>} : vector<4x2x128xi32>
    %12 = vector.shape_cast %4 : vector<2x128xi32> to vector<1x2x128xi32>
    %13 = vector.broadcast %12 : vector<1x2x128xi32> to vector<4x2x128xi32>
    %14 = arith.cmpi eq, %11, %13 : vector<4x2x128xi32>
    %cst_8 = arith.constant 0.000000e+00 : f32
    %15 = vector.broadcast %cst_8 : f32 to vector<4x2x128xf32>
    %16 = arith.select %14, %8, %15 : vector<4x2x128xi1>, vector<4x2x128xf32>
    %cst_9 = arith.constant dense<0.000000e+00> : vector<2x128xf32>
    %17 = vector.multi_reduction <add>, %16, %cst_9 [0] : vector<4x2x128xf32> to vector<2x128xf32>
    %c2_i32 = arith.constant 2 : i32
    %18 = arith.muli %arg1, %c2_i32 : i32
    %19 = tpu.iota {dimensions = array<i32: 0>} : vector<2x128xi32>
    %20 = vector.broadcast %18 : i32 to vector<2x128xi32>
    %21 = arith.addi %20, %19 : vector<2x128xi32>
    %c0_i32 = arith.constant 0 : i32
    %22 = vector.broadcast %c0_i32 : i32 to vector<2x128xi32>
    %23 = arith.cmpi sge, %4, %22 : vector<2x128xi32>
    %c2_i32_10 = arith.constant 2 : i32
    %24 = vector.broadcast %c2_i32_10 : i32 to vector<2x128xi32>
    %25 = arith.cmpi slt, %21, %24 : vector<2x128xi32>
    %26 = arith.andi %23, %25 : vector<2x128xi1>
    %27 = math.log %10 : vector<2x128xf32>
    %28 = arith.subf %27, %17 : vector<2x128xf32>
    %cst_11 = arith.constant 0.000000e+00 : f32
    %29 = vector.broadcast %cst_11 : f32 to vector<2x128xf32>
    %30 = arith.select %26, %28, %29 : vector<2x128xi1>, vector<2x128xf32>
    %cst_12 = arith.constant dense<0.000000e+00> : vector<128xf32>
    %31 = vector.multi_reduction <add>, %30, %cst_12 [0] : vector<2x128xf32> to vector<128xf32>
    %32 = vector.shape_cast %31 : vector<128xf32> to vector<1x128xf32>
    %33 = tpu.iota {dimensions = array<i32: 0>} : vector<8x128xi32>
    %c0_i32_13 = arith.constant 0 : i32
    %34 = vector.broadcast %c0_i32_13 : i32 to vector<8x128xi32>
    %35 = arith.cmpi eq, %33, %34 : vector<8x128xi32>
    %cst_14 = arith.constant 0.000000e+00 : f32
    %36 = vector.shape_cast %32 : vector<1x128xf32> to vector<1x128xf32>
    %37 = vector.broadcast %36 : vector<1x128xf32> to vector<8x128xf32>
    %38 = vector.broadcast %cst_14 : f32 to vector<8x128xf32>
    %39 = arith.select %35, %37, %38 : vector<8x128xi1>, vector<8x128xf32>
    %c0_15 = arith.constant 0 : index
    %c0_16 = arith.constant 0 : index
    %c0_17 = arith.constant 0 : index
    %c0_18 = arith.constant 0 : index
    %40 = vector.load %arg4[%c0_15, %c0_16, %c0_17, %c0_18] : memref<1x1x8x128xf32, #tpu.memory_space<vmem>>, vector<1x1x8x128xf32>
    %41 = vector.shape_cast %40 : vector<1x1x8x128xf32> to vector<8x128xf32>
    %42 = vector.shape_cast %39 : vector<8x128xf32> to vector<1x1x8x128xf32>
    tpu.vector_store %arg4[%c0_15, %c0_16, %c0_17, %c0_18], %42 {strides = array<i32>} : memref<1x1x8x128xf32, #tpu.memory_space<vmem>>, vector<1x1x8x128xf32>,
    return
  }
  func.func @transform_0(%arg0: i32, %arg1: i32) -> (i32, i32, i32, i32) {
    %c0_i32 = arith.constant 0 : i32
    %c0_i32_0 = arith.constant 0 : i32
    %c0_i32_1 = arith.constant 0 : i32
    return %arg0, %c0_i32, %arg1, %c0_i32_0 : i32, i32, i32, i32
  }
  func.func @transform_1(%arg0: i32, %arg1: i32) -> (i32, i32, i32, i32) {
    %c0_i32 = arith.constant 0 : i32
    %c0_i32_0 = arith.constant 0 : i32
    %c0_i32_1 = arith.constant 0 : i32
    return %arg0, %c0_i32, %arg1, %c0_i32_0 : i32, i32, i32, i32
  }
  func.func @transform_2(%arg0: i32, %arg1: i32) -> (i32, i32, i32, i32) {
    %c0_i32 = arith.constant 0 : i32
    %c0_i32_0 = arith.constant 0 : i32
    %c0_i32_1 = arith.constant 0 : i32
    return %arg0, %arg1, %c0_i32, %c0_i32_0 : i32, i32, i32, i32
  }
}

</mosaic_0001>

<llo_original>
// kernel: tpu_custom_call.1
$region0: #{tpu_custom_call.1}
  #allocation0 [shape = 'u32[]', space=smem, size = 0x4, offset = 0x4, fixed_abs, tag = 'smem constant byte address 0x4 - core index']
  #allocation1 [shape = 'u32[144,128]{1,0:T(1,128)}', space=vmem, size = 0x12000, scoped, tag = 'internal scratch']
  %s0 = inlined_call_operand.hbm [shape: f32[2,4,2,128], index: 0, kind: input, shape index: {}]
  %s1 = inlined_call_operand.hbm [shape: s8[2,1,2,128], index: 1, kind: input, shape index: {}]
  %s2 = inlined_call_operand.hbm [shape: f32[2,1,8,128], index: 2, kind: output, shape index: {}]
  %s3 = sld [smem:[#allocation0]]
  $region49: #{tpu_custom_call.1} parent=0
    _
  %s5 = ssub.s32 1, %s3
  %s6 = scalar_select 0, %s5, %s3
  $region1: #{tpu_custom_call.1} parent=0
    #allocation2 [shape = 'u8[8192]{0}', space=vmem, size = 0x2000, scoped, tag = 'input window, operand 0']
    #allocation3 [shape = 's32[2]{0}', space=sflag, size = 0x8, scoped, tag = 'scoped memory for tpu_custom_call.1']
    #allocation4 [shape = 's32[2]{0}', space=sflag, size = 0x8, scoped, tag = 'scoped memory for tpu_custom_call.1']
    #allocation5 [shape = 'u8[1024]{0}', space=vmem, size = 0x400, scoped, tag = 'input window, operand 1']
    #allocation6 [shape = 's32[2]{0}', space=sflag, size = 0x8, scoped, tag = 'scoped memory for tpu_custom_call.1']
    #allocation7 [shape = 'u8[8192]{0}', space=vmem, size = 0x2000, scoped, tag = 'output window, operand 0']
    %7 = vsyncpa [#allocation3], 0
    %s8 = scalar_lea.sflag [#allocation3], 1
    %9 = vsyncpa %s8, 0
    %10 = vsyncpa [#allocation6], 0
    %s11 = scalar_lea.sflag [#allocation6], 1
    %12 = vsyncpa %s11, 0
    %13 = vsyncpa [#allocation4], 0
    %s14 = scalar_lea.sflag [#allocation4], 1
    %15 = vsyncpa %s14, 0
    loop: start=0, step=1, limit=4
    $region2: #{tpu_custom_call.1} parent=1 // loop_pre_header
      _
    $region3: #{tpu_custom_call.1} parent=1 // loop_header
      %s17 = sphi 0, %s21
      %p18 = scmp.ge.s32.totalorder %s17, 4
      %s24 = sphi 0, %s36
      %s25 = sphi 0, %s32
      %s26 = sphi 0, %s24
      %s27 = sphi 0, %s25
      %s28 = sphi 0, %s26
      %s29 = sphi 0, %s27
      %s41 = sphi 0, %s43
      %s44 = sphi 0, %s41
      %s45 = sphi 0, %s44
      %s61 = sphi 0, %s45
      %s69 = sphi 0, %s71
      %s72 = sphi 0, %s69
      %s73 = sphi 0, %s72
      %s89 = sphi 0, %s73
      %s97 = sphi 0, %s99
      %s100 = sphi 0, %s97
      %s101 = sphi 0, %s100
      %s117 = sphi 0, %s101
    $region4: #{tpu_custom_call.1} parent=1 // loop_header_branch
      %20 = sbr.rel (%p18) target = $region8
    $region5: #{tpu_custom_call.1} parent=1 // loop_body
      %s22 = ssub.s32 %s17, 1
      %s23 = ssub.s32 %s17, 2
      %s30 = sadd.s32 1, %s25
      %p31 = scmp.ge.s32.totalorder %s30, 1
      %s32 = scalar_select %p31, 0, %s30
      %s33 = sadd.s32 1, %s24
      %s34 = scalar_select %p31, %s33, %s24
      %p35 = scmp.ge.s32.totalorder %s34, 2
      %s36 = scalar_select %p35, 0, %s34
      %s37 = ssub.s32 %s24, %s36
      %s38 = ssub.s32 %s25, %s32
      %s39 = sor.u32 %s37, %s38
      %p40 = scmp.eq.s32.totalorder %s39, 0
      %s42 = sadd.s32 %s41, 1
      %s43 = scalar_select %p40, %s41, %s42
      %p46 = pneg %p40
      %p47 = scmp.eq.s32.totalorder %s17, 1
      %p48 = por %p46, %p47
      %p49 = scmp.ne.s32.totalorder %s41, %s44
      %p50 = scmp.eq.s32.totalorder %s17, 0
      %p51 = por %p49, %p50
      %p52 = scmp.ne.s32.totalorder %s41, %s44
      %p53 = scmp.eq.s32.totalorder %s22, 1
      %p54 = por %p52, %p53
      %p55 = scmp.ne.s32.totalorder %s44, %s45
      %p56 = scmp.eq.s32.totalorder %s22, 0
      %p57 = por %p55, %p56
      %p58 = scmp.ne.s32.totalorder %s44, %s45
      %p59 = scmp.eq.s32.totalorder %s23, 1
      %p60 = por %p58, %p59
      %p62 = scmp.ne.s32.totalorder %s45, %s61
      %p63 = scmp.eq.s32.totalorder %s23, 0
      %p64 = por %p62, %p63
      %s65 = ssub.s32 %s24, %s36
      %s66 = ssub.s32 %s25, %s32
      %s67 = sor.u32 %s65, %s66
      %p68 = scmp.eq.s32.totalorder %s67, 0
      %s70 = sadd.s32 %s69, 1
      %s71 = scalar_select %p68, %s69, %s70
      %p74 = pneg %p68
      %p75 = scmp.eq.s32.totalorder %s17, 1
      %p76 = por %p74, %p75
      %p77 = scmp.ne.s32.totalorder %s69, %s72
      %p78 = scmp.eq.s32.totalorder %s17, 0
      %p79 = por %p77, %p78
      %p80 = scmp.ne.s32.totalorder %s69, %s72
      %p81 = scmp.eq.s32.totalorder %s22, 1
      %p82 = por %p80, %p81
      %p83 = scmp.ne.s32.totalorder %s72, %s73
      %p84 = scmp.eq.s32.totalorder %s22, 0
      %p85 = por %p83, %p84
      %p86 = scmp.ne.s32.totalorder %s72, %s73
      %p87 = scmp.eq.s32.totalorder %s23, 1
      %p88 = por %p86, %p87
      %p90 = scmp.ne.s32.totalorder %s73, %s89
      %p91 = scmp.eq.s32.totalorder %s23, 0
      %p92 = por %p90, %p91
      %s93 = ssub.s32 %s24, %s36
      %s94 = ssub.s32 %s25, %s32
      %s95 = sor.u32 %s93, %s94
      %p96 = scmp.eq.s32.totalorder %s95, 0
      %s98 = sadd.s32 %s97, 1
      %s99 = scalar_select %p96, %s97, %s98
      %p102 = pneg %p96
      %p103 = scmp.eq.s32.totalorder %s17, 1
      %p104 = por %p102, %p103
      %p105 = scmp.ne.s32.totalorder %s97, %s100
      %p106 = scmp.eq.s32.totalorder %s17, 0
      %p107 = por %p105, %p106
      %p108 = scmp.ne.s32.totalorder %s97, %s100
      %p109 = scmp.eq.s32.totalorder %s22, 1
      %p110 = por %p108, %p109
      %p111 = scmp.ne.s32.totalorder %s100, %s101
      %p112 = scmp.eq.s32.totalorder %s22, 0
      %p113 = por %p111, %p112
      %p114 = scmp.ne.s32.totalorder %s100, %s101
      %p115 = scmp.eq.s32.totalorder %s23, 1
      %p116 = por %p114, %p115
      %p118 = scmp.ne.s32.totalorder %s101, %s117
      %p119 = scmp.eq.s32.totalorder %s23, 0
      %p120 = por %p118, %p119
      %p121 = scmp.le.s32.totalorder 1, %s17
      %p122 = scmp.lt.s32.totalorder %s17, 3
      %p123 = pnand %p121, %p122
      %p124 = pneg %p123
      // Predicated region
      $region9: #{tpu_custom_call.1} parent=5 // pred_check
        _
      $region10: #{tpu_custom_call.1} parent=5 // pred_check_branch
        %126 = sbr.rel (%p123) target = $region12
      $region11: #{tpu_custom_call.1} parent=5 // pred_region
        %s127 = ssub.s32 %s17, 1
      $region12: #{tpu_custom_call.1} parent=5 // pred_fallthru
        _
      %p128 = scmp.lt.s32.totalorder %s17, 2
      // Predicated region
      $region13: #{tpu_custom_call.1} parent=5 // pred_check
        %p129 = pneg %p128
      $region14: #{tpu_custom_call.1} parent=5 // pred_check_branch
        %131 = sbr.rel (%p129) target = $region16
      $region15: #{tpu_custom_call.1} parent=5 // pred_region
        // Predicated region
        $region17: #{tpu_custom_call.1} parent=15 // pred_check
          %p132 = pneg %p51
        $region18: #{tpu_custom_call.1} parent=15 // pred_check_branch
          %134 = sbr.rel (%p132) target = $region20
        $region19: #{tpu_custom_call.1} parent=15 // pred_region
          %s135 = sand.u32 %s41, 1
          %s136 = scalar_lea.sflag [#allocation3], %s135
          %s137 = sand.u32 %s41, 1
          %s138 = smul.addr %s137, 8
          %s139 = scalar_lea.vmem [#allocation2], %s138
          %s141 = ssub.s32 128, 128
          %142 = vsyncadd %s136, %s141
          %s143 = smul.addr %s24, 4
          %s144 = sadd.s32 %s25, %s143
          %s145 = smul.addr %s144, 32
          %s146 = scalar_lea.hbm %s0, %s145
          %s147 = sshll.u32 %s139, 4
          %s148 = int_to_ptr.vmem [resolvable:$true] %s147
          %153 = dma.hbm_to_vmem [thread:$0]  %s146, 128, %s148, %s136, 32, 32, 2
        $region20: #{tpu_custom_call.1} parent=15 // pred_fallthru
          _
        // Predicated region
        $region21: #{tpu_custom_call.1} parent=15 // pred_check
          %p154 = pneg %p79
        $region22: #{tpu_custom_call.1} parent=15 // pred_check_branch
          %156 = sbr.rel (%p154) target = $region24
        $region23: #{tpu_custom_call.1} parent=15 // pred_region
          %s157 = sand.u32 %s69, 1
          %s158 = scalar_lea.sflag [#allocation6], %s157
          %s159 = sand.u32 %s69, 1
          %s160 = scalar_lea.vmem [#allocation5], %s159
          %s162 = ssub.s32 16, 16
          %163 = vsyncadd %s158, %s162
          %s164 = sadd.s32 %s25, %s24
          %s165 = smul.addr %s164, 16
          %s166 = scalar_lea.hbm %s1, %s165
          %s168 = sshll.u32 %s160, 4
          %s169 = int_to_ptr.vmem [resolvable:$true] %s168
          %171 = dma.hbm_to_vmem [thread:$0]  %s166, 16, %s169, %s158
        $region24: #{tpu_custom_call.1} parent=15 // pred_fallthru
          _
      $region16: #{tpu_custom_call.1} parent=5 // pred_fallthru
        _
      %p172 = scmp.le.s32.totalorder 1, %s17
      %p173 = scmp.lt.s32.totalorder %s17, 3
      %p174 = pnand %p172, %p173
      %p175 = pneg %p174
      // Predicated region
      $region25: #{tpu_custom_call.1} parent=5 // pred_check
        _
      $region26: #{tpu_custom_call.1} parent=5 // pred_check_branch
        %177 = sbr.rel (%p174) target = $region28
      $region27: #{tpu_custom_call.1} parent=5 // pred_region
        %s178 = ssub.s32 %s17, 1
        %s179 = sand.u32 %s44, 1
        %s180 = scalar_lea.sflag [#allocation3], %s179
        %s181 = sand.u32 %s44, 1
        %s182 = smul.addr %s181, 8
        %s183 = scalar_lea.vmem [#allocation2], %s182
        // Predicated region
        $region29: #{tpu_custom_call.1} parent=27 // pred_check
          %p184 = pneg %p57
        $region30: #{tpu_custom_call.1} parent=27 // pred_check_branch
          %186 = sbr.rel (%p184) target = $region32
        $region31: #{tpu_custom_call.1} parent=27 // pred_region
          %187 = dma.done %s180, 128
        $region32: #{tpu_custom_call.1} parent=27 // pred_fallthru
          _
        %s188 = sand.u32 %s72, 1
        %s189 = scalar_lea.sflag [#allocation6], %s188
        %s190 = sand.u32 %s72, 1
        %s191 = scalar_lea.vmem [#allocation5], %s190
        // Predicated region
        $region33: #{tpu_custom_call.1} parent=27 // pred_check
          %p192 = pneg %p85
        $region34: #{tpu_custom_call.1} parent=27 // pred_check_branch
          %194 = sbr.rel (%p192) target = $region36
        $region35: #{tpu_custom_call.1} parent=27 // pred_region
          %195 = dma.done %s189, 16
        $region36: #{tpu_custom_call.1} parent=27 // pred_fallthru
          _
        %s196 = sand.u32 %s44, 1
        %s197 = scalar_lea.sflag [#allocation3], %s196
        %s198 = sand.u32 %s44, 1
        %s199 = smul.addr %s198, 8
        %s200 = scalar_lea.vmem [#allocation2], %s199
        %p201 = pneg %p57
        %p202 = pneg %p54
        %s203 = sand.u32 %s72, 1
        %s204 = scalar_lea.sflag [#allocation6], %s203
        %s205 = sand.u32 %s72, 1
        %s206 = scalar_lea.vmem [#allocation5], %s205
        %p207 = pneg %p85
        %p208 = pneg %p82
        %p209 = pneg %p113
        %p210 = pneg %p110
        %s211 = sand.u32 %s100, 1
        %s212 = scalar_lea.sflag [#allocation4], %s211
        %s213 = sand.u32 %s100, 1
        %s214 = smul.addr %s213, 8
        %s215 = scalar_lea.vmem [#allocation7], %s214
        %v216 = vld [vmem:[%s183] sm:$0x3]
        %v217 = vld [vmem:[%s183 + $0x2] sm:$0x3]
        %v218 = vld [vmem:[%s183 + $0x4] sm:$0x3]
        %v219 = vld [vmem:[%s183 + $0x6] sm:$0x3]
        %v220 = vld [vmem:[%s191] sm:$0x1]
        %v221 = vunpack.c.0.s8 %v220
        %vm222 = vcmask 1041408
        %v223 = vsel %vm222, %v216, -inf
        %v224 = vsel %vm222, %v217, -inf
        %v225 = vsel %vm222, %v218, -inf
        %v226 = vsel %vm222, %v219, -inf
        %v227 = vmax.f32 %v223, %v224
        %v228 = vmax.f32 %v225, %v226
        %v229 = vmax.f32 %v227, %v228
        %v230 = vsub.f32 %v216, %v229
        %v231 = vsub.f32 %v217, %v229
        %v232 = vsub.f32 %v218, %v229
        %v233 = vsub.f32 %v219, %v229
        %v234 = vmul.f32 %v230, 1.442695
        %v235 = vpow.pop %v234
        %v236 = vmul.f32 %v231, 1.442695
        %v237 = vpow.pop %v236
        %v238 = vmul.f32 %v232, 1.442695
        %v239 = vpow.pop %v238
        %v240 = vmul.f32 %v233, 1.442695
        %v241 = vpow.pop %v240
        %v242 = vsel %vm222, %v235, 0.0
        %v243 = vsel %vm222, %v237, 0.0
        %v244 = vadd.f32 %v242, %v243
        %v245 = vsel %vm222, %v239, 0.0
        %v246 = vadd.f32 %v244, %v245
        %v247 = vsel %vm222, %v241, 0.0
        %v248 = vadd.f32 %v246, %v247
        %vm249 = vcmp.eq.s32.totalorder %v221, 0
        %vm250 = vcmp.eq.s32.totalorder %v221, 1
        %vm251 = vcmp.eq.s32.totalorder %v221, 2
        %vm252 = vcmp.eq.s32.totalorder %v221, 3
        %v253 = vsel %vm249, %v230, 0.0
        %v254 = vsel %vm250, %v231, 0.0
        %v255 = vsel %vm251, %v232, 0.0
        %v256 = vsel %vm252, %v233, 0.0
        %v257 = vsel %vm222, %v253, 0.0
        %v258 = vsel %vm222, %v254, 0.0
        %v259 = vadd.f32 %v257, %v258
        %v260 = vsel %vm222, %v255, 0.0
        %v261 = vadd.f32 %v259, %v260
        %v262 = vsel %vm222, %v256, 0.0
        %v263 = vadd.f32 %v261, %v262
        %s264 = smul.u32 %s27, 2
        %v265 = vlaneseq
        %v266 = vshrl.u32 %v265, 7
        %v267 = vstv %s264
        %v268 = vadd.s32 %v267, %v266
        %vm269 = vcmp.ge.s32.totalorder %v221, 0
        %vm270 = vcmp.lt.s32.totalorder %v268, 2
        %vm271 = vmand %vm269, %vm270
        %v272 = vlog2.pop %v248
        %v273 = vmul.f32 %v272, 0.6931472
        %v274 = vsub.f32 %v273, %v263
        %v275 = vsel %vm271, %v274, 0.0
        %v276 = vsel %vm222, %v275, 0.0
        %v277 = vrot.slane %v276, 4
        %v278 = vadd.f32 %v276, %v277
        %v279 = vrot.slane %v278, 2
        %v280 = vadd.f32 %v278, %v279
        %v281 = vrot.slane %v280, 1
        %v282 = vadd.f32 %v280, %v281
        %vm283 = vcmp.eq.s32.totalorder %v266, 0
        %v284 = vsel %vm283, %v282, 0.0
        %285 = vst [vmem:[%s215] sm:$0xff] %v284
        %s286 = sand.u32 %s100, 1
        %s287 = scalar_lea.sflag [#allocation4], %s286
        %s288 = sand.u32 %s100, 1
        %s289 = smul.addr %s288, 8
        %s290 = scalar_lea.vmem [#allocation7], %s289
        // Predicated region
        $region37: #{tpu_custom_call.1} parent=27 // pred_check
          %p291 = pneg %p110
        $region38: #{tpu_custom_call.1} parent=27 // pred_check_branch
          %293 = sbr.rel (%p291) target = $region40
        $region39: #{tpu_custom_call.1} parent=27 // pred_region
          %s295 = ssub.s32 128, 128
          %296 = vsyncadd %s287, %s295
          %s297 = sadd.s32 %s27, %s26
          %s298 = smul.addr %s297, 128
          %s299 = scalar_lea.hbm %s2, %s298
          %s301 = sshll.u32 %s290, 4
          %s302 = int_to_ptr.vmem [resolvable:$true] %s301
          %304 = dma.vmem_to_hbm [thread:$0]  %s302, 128, %s299, %s287
        $region40: #{tpu_custom_call.1} parent=27 // pred_fallthru
          _
      $region28: #{tpu_custom_call.1} parent=5 // pred_fallthru
        _
      %p305 = scmp.le.s32.totalorder 2, %s17
      // Predicated region
      $region41: #{tpu_custom_call.1} parent=5 // pred_check
        %p306 = pneg %p305
      $region42: #{tpu_custom_call.1} parent=5 // pred_check_branch
        %308 = sbr.rel (%p306) target = $region44
      $region43: #{tpu_custom_call.1} parent=5 // pred_region
        %s309 = ssub.s32 %s17, 2
        // Predicated region
        $region45: #{tpu_custom_call.1} parent=43 // pred_check
          %p310 = pneg %p116
        $region46: #{tpu_custom_call.1} parent=43 // pred_check_branch
          %312 = sbr.rel (%p310) target = $region48
        $region47: #{tpu_custom_call.1} parent=43 // pred_region
          %s313 = sand.u32 %s101, 1
          %s314 = scalar_lea.sflag [#allocation4], %s313
          %s315 = sand.u32 %s101, 1
          %s316 = smul.addr %s315, 8
          %s317 = scalar_lea.vmem [#allocation7], %s316
          %318 = dma.done %s314, 128
        $region48: #{tpu_custom_call.1} parent=43 // pred_fallthru
          _
      $region44: #{tpu_custom_call.1} parent=5 // pred_fallthru
        _
    $region6: #{tpu_custom_call.1} parent=1 // loop_footer
      %s21 = sadd.s32 1, %s17
    $region7: #{tpu_custom_call.1} parent=1 // loop_footer_branch
      %16 = sbr.rel target = $region3
    $region8: #{tpu_custom_call.1} parent=1 // loop_exit
      _
    %319 = vsyncpa [#allocation3], 1
    %s320 = scalar_lea.sflag [#allocation3], 1
    %321 = vsyncpa %s320, 1
    %322 = vsyncpa [#allocation6], 1
    %s323 = scalar_lea.sflag [#allocation6], 1
    %324 = vsyncpa %s323, 1
    %325 = vsyncpa [#allocation4], 1
    %s326 = scalar_lea.sflag [#allocation4], 1
    %327 = vsyncpa %s326, 1

</llo_original>
